<compile_context>
chip_gen: v6e
topology: v6e:2x2x1
jax: 0.10.0
libtpu: 0.0.40
codegen_flags: <defaults>
</compile_context>

<pallas_src>
import functools
import math

import jax
import jax.numpy as jnp
from jax.experimental import pallas as pl
from jax.experimental.pallas import tpu as pltpu


INPUT_SIZE = 9
HIDDEN_SIZE = 128
HIDDEN_HALF = HIDDEN_SIZE // 2
OUTPUT_SIZE = 9

MAX_TILE_B = 2048                      # batch-tile ceiling (safe on v7x's 64 MiB VMEM too)
VMEM_LIMIT_BYTES = 32 * 1024 * 1024    # explicit; v5e default scoped limit is only 16 MiB


def _round_up(x, m):
    return ((x + m - 1) // m) * m


def _xavier_uniform(key, fan_in, fan_out, dtype=jnp.float32):
    """Matches torch.nn.init.xavier_uniform_ (gain=1); stored (in, out)."""
    limit = math.sqrt(6.0 / (fan_in + fan_out))
    return jax.random.uniform(
        key, (fan_in, fan_out), dtype=dtype, minval=-limit, maxval=limit
    )


def init_params(key):
    """f32 master params (xavier_uniform_ weights, zero biases), like the torch module."""
    k1, k2, k3, k4 = jax.random.split(key, 4)
    return {
        "w1": _xavier_uniform(k1, INPUT_SIZE, HIDDEN_SIZE),
        "b1": jnp.zeros((1, HIDDEN_SIZE), jnp.float32),
        "w2": _xavier_uniform(k2, HIDDEN_SIZE, HIDDEN_SIZE),
        "b2": jnp.zeros((1, HIDDEN_SIZE), jnp.float32),
        "w3": _xavier_uniform(k3, HIDDEN_SIZE, HIDDEN_HALF),
        "b3": jnp.zeros((1, HIDDEN_HALF), jnp.float32),
        "w4": _xavier_uniform(k4, HIDDEN_HALF, OUTPUT_SIZE),
        "b4": jnp.zeros((1, OUTPUT_SIZE), jnp.float32),
    }


def prepare_params(params):
    """One-time preprocessing, hoisted out of the forward: bf16 weights, f32 biases."""
    return {
        "w1": params["w1"].astype(jnp.bfloat16),
        "w2": params["w2"].astype(jnp.bfloat16),
        "w3": params["w3"].astype(jnp.bfloat16),
        "w4": params["w4"].astype(jnp.bfloat16),
        "b1": params["b1"].astype(jnp.float32),
        "b2": params["b2"].astype(jnp.float32),
        "b3": params["b3"].astype(jnp.float32),
        "b4": params["b4"].astype(jnp.float32),
    }


def _mlp_kernel(x_ref, w1_ref, b1_ref, w2_ref, b2_ref,
                w3_ref, b3_ref, w4_ref, b4_ref, out_ref):
    # bf16 MXU operands, f32 accumulation; elementwise (bias-add / ReLU) stays f32.
    x = x_ref[...].astype(jnp.bfloat16)

    # fc1 + ReLU   (Dropout(0.2) is identity in eval mode)
    h = jnp.dot(x, w1_ref[...], preferred_element_type=jnp.float32) + b1_ref[...]
    h = jnp.maximum(h, 0.0)
    # TODO(synk): training-mode Dropout(0.2) (stochastic masking) not implemented;
    # inference semantics (identity) are used, matching model.eval().

    # fc2 + ReLU
    h = jnp.dot(h.astype(jnp.bfloat16), w2_ref[...],
                preferred_element_type=jnp.float32) + b2_ref[...]
    h = jnp.maximum(h, 0.0)

    # fc3 + ReLU
    h = jnp.dot(h.astype(jnp.bfloat16), w3_ref[...],
                preferred_element_type=jnp.float32) + b3_ref[...]
    h = jnp.maximum(h, 0.0)

    # fc4 — 9-wide output is the full last dim: contiguous full-row write.
    out = jnp.dot(h.astype(jnp.bfloat16), w4_ref[...],
                  preferred_element_type=jnp.float32) + b4_ref[...]
    out_ref[...] = out.astype(out_ref.dtype)


def _choose_tile_b(batch, tile_b):
    # (8,128) sublane rule: batch block must be a multiple of 8 (or the full dim).
    tile_b = _round_up(max(int(tile_b), 8), 8)
    tile_b = min(tile_b, MAX_TILE_B)
    padded8 = _round_up(batch, 8)
    tile_b = min(tile_b, padded8)
    # v7x: keep >= 2 grid steps when there is enough work so ("parallel",)
    # actually engages both TensorCores (harmless no-op on v5e/v6e).
    if padded8 >= 16:
        half = _round_up((padded8 + 1) // 2, 8)
        tile_b = min(tile_b, half)
    return tile_b


@functools.partial(jax.jit, static_argnames=("tile_b",))
def _forward_impl(x, params, tile_b):
    batch = x.shape[0]
    padded_batch = _round_up(batch, tile_b)
    if padded_batch != batch:
        x = jnp.pad(x, ((0, padded_batch - batch), (0, 0)))

    grid = (padded_batch // tile_b,)

    def resident(shape):
        # Weights/biases: same block every grid step -> DMA'd once, VMEM-resident.
        return pl.BlockSpec(shape, lambda i: (0, 0))

    layer_weights = (INPUT_SIZE * HIDDEN_SIZE + HIDDEN_SIZE * HIDDEN_SIZE
                     + HIDDEN_SIZE * HIDDEN_HALF + HIDDEN_HALF * OUTPUT_SIZE)
    cost = pl.CostEstimate(
        flops=2 * padded_batch * layer_weights,
        transcendentals=0,
        bytes_accessed=(padded_batch * INPUT_SIZE * 4            # x read
                        + padded_batch * OUTPUT_SIZE * 4         # logits write
                        + 2 * layer_weights),                    # bf16 weights read
    )

    out = pl.pallas_call(
        _mlp_kernel,
        out_shape=jax.ShapeDtypeStruct((padded_batch, OUTPUT_SIZE), jnp.float32),
        grid=grid,
        in_specs=[
            pl.BlockSpec((tile_b, INPUT_SIZE), lambda i: (i, 0)),   # x tile
            resident((INPUT_SIZE, HIDDEN_SIZE)),                    # w1 (bf16)
            resident((1, HIDDEN_SIZE)),                             # b1
            resident((HIDDEN_SIZE, HIDDEN_SIZE)),                   # w2 (bf16)
            resident((1, HIDDEN_SIZE)),                             # b2
            resident((HIDDEN_SIZE, HIDDEN_HALF)),                   # w3 (bf16)
            resident((1, HIDDEN_HALF)),                             # b3
            resident((HIDDEN_HALF, OUTPUT_SIZE)),                   # w4 (bf16)
            resident((1, OUTPUT_SIZE)),                             # b4
        ],
        out_specs=pl.BlockSpec((tile_b, OUTPUT_SIZE), lambda i: (i, 0)),
        compiler_params=pltpu.CompilerParams(
            dimension_semantics=("parallel",),      # shard batch tiles over v7x's 2 TCs
            vmem_limit_bytes=VMEM_LIMIT_BYTES,
        ),
        cost_estimate=cost,
    )(
        x,
        params["w1"], params["b1"],
        params["w2"], params["b2"],
        params["w3"], params["b3"],
        params["w4"], params["b4"],
    )

    return out[:batch] if padded_batch != batch else out


def tictactoe_net_forward(x, prepared_params, *, tile_b=MAX_TILE_B):
    """Eval-mode Pallas forward. x: (batch, 9) f32 -> (batch, 9) f32 logits."""
    tile = _choose_tile_b(x.shape[0], tile_b)
    return _forward_impl(x, prepared_params, tile)


def _reference_forward(x, params):
    """Plain-JAX f32 reference for correctness checking."""
    h = jnp.maximum(x @ params["w1"] + params["b1"], 0.0)
    h = jnp.maximum(h @ params["w2"] + params["b2"], 0.0)
    h = jnp.maximum(h @ params["w3"] + params["b3"], 0.0)
    return h @ params["w4"] + params["b4"]


if __name__ == "__main__":
    key = jax.random.PRNGKey(0)
    pkey, xkey1, xkey2 = jax.random.split(key, 3)

    params = init_params(pkey)
    prepared = prepare_params(params)   # one-time bf16 cast, outside the forward

    # Batch of flattened tic-tac-toe boards with values in {-1, 0, 1}.
    batch = 8
    x = jax.random.randint(
        xkey1, (batch, INPUT_SIZE), minval=-1, maxval=2
    ).astype(jnp.float32)

    logits = jax.block_until_ready(tictactoe_net_forward(x, prepared))
    ref = _reference_forward(x, params)
    assert logits.shape == (batch, OUTPUT_SIZE)
    # bf16 dot operands (intentional precision change) -> relaxed tolerance vs f32 ref.
    assert jnp.allclose(logits, ref, atol=5e-2, rtol=5e-2), "mismatch vs reference"

    # Ragged batch (batch % tile != 0) exercises wrapper padding + row slicing.
    batch2 = 13
    x2 = jax.random.randint(
        xkey2, (batch2, INPUT_SIZE), minval=-1, maxval=2
    ).astype(jnp.float32)
    logits2 = jax.block_until_ready(tictactoe_net_forward(x2, prepared))
    ref2 = _reference_forward(x2, params)
    assert logits2.shape == (batch2, OUTPUT_SIZE)
    assert jnp.allclose(logits2, ref2, atol=5e-2, rtol=5e-2), "ragged mismatch"

    print("KERNEL_OK")
</pallas_src>

<mosaic_0001>
module attributes {stable_mosaic.version = 11 : i64} {
  func.func @_mlp_kernel(%arg0: i32, %arg1: memref<8x9xf32, #tpu.memory_space<vmem>>, %arg2: memref<9x128xbf16, #tpu.memory_space<vmem>>, %arg3: memref<1x128xf32, #tpu.memory_space<vmem>>, %arg4: memref<128x128xbf16, #tpu.memory_space<vmem>>, %arg5: memref<1x128xf32, #tpu.memory_space<vmem>>, %arg6: memref<128x64xbf16, #tpu.memory_space<vmem>>, %arg7: memref<1x64xf32, #tpu.memory_space<vmem>>, %arg8: memref<64x9xbf16, #tpu.memory_space<vmem>>, %arg9: memref<1x9xf32, #tpu.memory_space<vmem>>, %arg10: memref<8x9xf32, #tpu.memory_space<vmem>>) attributes {dimension_semantics = [#tpu.dimension_semantics<parallel>], iteration_bounds = array<i64: 1>, scalar_prefetch = 0 : i64, scratch_operands = 0 : i64, tpu.core_type = #tpu.core_type<tc>, window_params = [{transform_indices = @transform_0, window_bounds = array<i64: 8, 9>}, {pipeline_mode = #tpu.pipeline_mode<synchronous>, transform_indices = @transform_1, window_bounds = array<i64: 9, 128>}, {pipeline_mode = #tpu.pipeline_mode<synchronous>, transform_indices = @transform_2, window_bounds = array<i64: 1, 128>}, {pipeline_mode = #tpu.pipeline_mode<synchronous>, transform_indices = @transform_3, window_bounds = array<i64: 128, 128>}, {pipeline_mode = #tpu.pipeline_mode<synchronous>, transform_indices = @transform_4, window_bounds = array<i64: 1, 128>}, {pipeline_mode = #tpu.pipeline_mode<synchronous>, transform_indices = @transform_5, window_bounds = array<i64: 128, 64>}, {pipeline_mode = #tpu.pipeline_mode<synchronous>, transform_indices = @transform_6, window_bounds = array<i64: 1, 64>}, {pipeline_mode = #tpu.pipeline_mode<synchronous>, transform_indices = @transform_7, window_bounds = array<i64: 64, 9>}, {pipeline_mode = #tpu.pipeline_mode<synchronous>, transform_indices = @transform_8, window_bounds = array<i64: 1, 9>}, {transform_indices = @transform_9, window_bounds = array<i64: 8, 9>}]} {
    %c0 = arith.constant 0 : index
    %c0_0 = arith.constant 0 : index
    %0 = vector.load %arg1[%c0, %c0_0] : memref<8x9xf32, #tpu.memory_space<vmem>>, vector<8x9xf32>
    %1 = arith.truncf %0 : vector<8x9xf32> to vector<8x9xbf16>
    %c0_1 = arith.constant 0 : index
    %c0_2 = arith.constant 0 : index
    %2 = vector.load %arg2[%c0_1, %c0_2] : memref<9x128xbf16, #tpu.memory_space<vmem>>, vector<9x128xbf16>
    %cst = arith.constant dense<0.000000e+00> : vector<8x128xf32>
    %3 = tpu.matmul %1, %2, %cst {dimension_numbers = #tpu.dot_dimension_numbers<[1], [0], [0], [1], [0, 0, 1, 1], [], []>} : vector<8x9xbf16>, vector<9x128xbf16>, vector<8x128xf32> -> vector<8x128xf32>
    %c0_3 = arith.constant 0 : index
    %c0_4 = arith.constant 0 : index
    %4 = vector.load %arg3[%c0_3, %c0_4] : memref<1x128xf32, #tpu.memory_space<vmem>>, vector<1x128xf32>
    %5 = vector.broadcast %4 : vector<1x128xf32> to vector<8x128xf32>
    %6 = arith.addf %3, %5 : vector<8x128xf32>
    %cst_5 = arith.constant 0.000000e+00 : f32
    %7 = vector.broadcast %cst_5 : f32 to vector<8x128xf32>
    %8 = arith.maximumf %6, %7 : vector<8x128xf32>
    %9 = arith.truncf %8 : vector<8x128xf32> to vector<8x128xbf16>
    %c0_6 = arith.constant 0 : index
    %c0_7 = arith.constant 0 : index
    %10 = vector.load %arg4[%c0_6, %c0_7] : memref<128x128xbf16, #tpu.memory_space<vmem>>, vector<128x128xbf16>
    %cst_8 = arith.constant dense<0.000000e+00> : vector<8x128xf32>
    %11 = tpu.matmul %9, %10, %cst_8 {dimension_numbers = #tpu.dot_dimension_numbers<[1], [0], [0], [1], [0, 0, 1, 1], [], []>} : vector<8x128xbf16>, vector<128x128xbf16>, vector<8x128xf32> -> vector<8x128xf32>
    %c0_9 = arith.constant 0 : index
    %c0_10 = arith.constant 0 : index
    %12 = vector.load %arg5[%c0_9, %c0_10] : memref<1x128xf32, #tpu.memory_space<vmem>>, vector<1x128xf32>
    %13 = vector.broadcast %12 : vector<1x128xf32> to vector<8x128xf32>
    %14 = arith.addf %11, %13 : vector<8x128xf32>
    %cst_11 = arith.constant 0.000000e+00 : f32
    %15 = vector.broadcast %cst_11 : f32 to vector<8x128xf32>
    %16 = arith.maximumf %14, %15 : vector<8x128xf32>
    %17 = arith.truncf %16 : vector<8x128xf32> to vector<8x128xbf16>
    %c0_12 = arith.constant 0 : index
    %c0_13 = arith.constant 0 : index
    %18 = vector.load %arg6[%c0_12, %c0_13] : memref<128x64xbf16, #tpu.memory_space<vmem>>, vector<128x64xbf16>
    %cst_14 = arith.constant dense<0.000000e+00> : vector<8x64xf32>
    %19 = tpu.matmul %17, %18, %cst_14 {dimension_numbers = #tpu.dot_dimension_numbers<[1], [0], [0], [1], [0, 0, 1, 1], [], []>} : vector<8x128xbf16>, vector<128x64xbf16>, vector<8x64xf32> -> vector<8x64xf32>
    %c0_15 = arith.constant 0 : index
    %c0_16 = arith.constant 0 : index
    %20 = vector.load %arg7[%c0_15, %c0_16] : memref<1x64xf32, #tpu.memory_space<vmem>>, vector<1x64xf32>
    %21 = vector.broadcast %20 : vector<1x64xf32> to vector<8x64xf32>
    %22 = arith.addf %19, %21 : vector<8x64xf32>
    %cst_17 = arith.constant 0.000000e+00 : f32
    %23 = vector.broadcast %cst_17 : f32 to vector<8x64xf32>
    %24 = arith.maximumf %22, %23 : vector<8x64xf32>
    %25 = arith.truncf %24 : vector<8x64xf32> to vector<8x64xbf16>
    %c0_18 = arith.constant 0 : index
    %c0_19 = arith.constant 0 : index
    %26 = vector.load %arg8[%c0_18, %c0_19] : memref<64x9xbf16, #tpu.memory_space<vmem>>, vector<64x9xbf16>
    %cst_20 = arith.constant dense<0.000000e+00> : vector<8x9xf32>
    %27 = tpu.matmul %25, %26, %cst_20 {dimension_numbers = #tpu.dot_dimension_numbers<[1], [0], [0], [1], [0, 0, 1, 1], [], []>} : vector<8x64xbf16>, vector<64x9xbf16>, vector<8x9xf32> -> vector<8x9xf32>
    %c0_21 = arith.constant 0 : index
    %c0_22 = arith.constant 0 : index
    %28 = vector.load %arg9[%c0_21, %c0_22] : memref<1x9xf32, #tpu.memory_space<vmem>>, vector<1x9xf32>
    %29 = vector.broadcast %28 : vector<1x9xf32> to vector<8x9xf32>
    %30 = arith.addf %27, %29 : vector<8x9xf32>
    %c0_23 = arith.constant 0 : index
    %c0_24 = arith.constant 0 : index
    %31 = vector.load %arg10[%c0_23, %c0_24] : memref<8x9xf32, #tpu.memory_space<vmem>>, vector<8x9xf32>
    tpu.vector_store %arg10[%c0_23, %c0_24], %30 {strides = array<i32>} : memref<8x9xf32, #tpu.memory_space<vmem>>, vector<8x9xf32>,
    return
  }
  func.func @transform_0(%arg0: i32) -> (i32, i32) {
    %c0_i32 = arith.constant 0 : i32
    %c0_i32_0 = arith.constant 0 : i32
    return %arg0, %c0_i32 : i32, i32
  }
  func.func @transform_1(%arg0: i32) -> (i32, i32) {
    %c0_i32 = arith.constant 0 : i32
    %c0_i32_0 = arith.constant 0 : i32
    %c0_i32_1 = arith.constant 0 : i32
    return %c0_i32, %c0_i32_0 : i32, i32
  }
  func.func @transform_2(%arg0: i32) -> (i32, i32) {
    %c0_i32 = arith.constant 0 : i32
    %c0_i32_0 = arith.constant 0 : i32
    %c0_i32_1 = arith.constant 0 : i32
    return %c0_i32, %c0_i32_0 : i32, i32
  }
  func.func @transform_3(%arg0: i32) -> (i32, i32) {
    %c0_i32 = arith.constant 0 : i32
    %c0_i32_0 = arith.constant 0 : i32
    %c0_i32_1 = arith.constant 0 : i32
    return %c0_i32, %c0_i32_0 : i32, i32
  }
  func.func @transform_4(%arg0: i32) -> (i32, i32) {
    %c0_i32 = arith.constant 0 : i32
    %c0_i32_0 = arith.constant 0 : i32
    %c0_i32_1 = arith.constant 0 : i32
    return %c0_i32, %c0_i32_0 : i32, i32
  }
  func.func @transform_5(%arg0: i32) -> (i32, i32) {
    %c0_i32 = arith.constant 0 : i32
    %c0_i32_0 = arith.constant 0 : i32
    %c0_i32_1 = arith.constant 0 : i32
    return %c0_i32, %c0_i32_0 : i32, i32
  }
  func.func @transform_6(%arg0: i32) -> (i32, i32) {
    %c0_i32 = arith.constant 0 : i32
    %c0_i32_0 = arith.constant 0 : i32
    %c0_i32_1 = arith.constant 0 : i32
    return %c0_i32, %c0_i32_0 : i32, i32
  }
  func.func @transform_7(%arg0: i32) -> (i32, i32) {
    %c0_i32 = arith.constant 0 : i32
    %c0_i32_0 = arith.constant 0 : i32
    %c0_i32_1 = arith.constant 0 : i32
    return %c0_i32, %c0_i32_0 : i32, i32
  }
  func.func @transform_8(%arg0: i32) -> (i32, i32) {
    %c0_i32 = arith.constant 0 : i32
    %c0_i32_0 = arith.constant 0 : i32
    %c0_i32_1 = arith.constant 0 : i32
    return %c0_i32, %c0_i32_0 : i32, i32
  }
  func.func @transform_9(%arg0: i32) -> (i32, i32) {
    %c0_i32 = arith.constant 0 : i32
    %c0_i32_0 = arith.constant 0 : i32
    return %arg0, %c0_i32 : i32, i32
  }
}

</mosaic_0001>

<llo_original>
// kernel: _forward_impl.1
$region0: #{_forward_impl.1}
  #allocation0 [shape = 'u32[]', space=smem, size = 0x4, offset = 0x4, fixed_abs, tag = 'smem constant byte address 0x4 - core index']
  #allocation1 [shape = 'u32[144,128]{1,0:T(1,128)}', space=vmem, size = 0x12000, scoped, tag = 'internal scratch']
  %s0 = inlined_call_operand.vmem [shape: f32[8,9], index: 0, kind: input, shape index: {}]
  %s1 = inlined_call_operand.vmem [shape: bf16[9,128], index: 1, kind: input, shape index: {}]
  %s2 = inlined_call_operand.vmem [shape: f32[1,128], index: 2, kind: input, shape index: {}]
  %s3 = inlined_call_operand.vmem [shape: bf16[128,128], index: 3, kind: input, shape index: {}]
  %s4 = inlined_call_operand.vmem [shape: f32[1,128], index: 4, kind: input, shape index: {}]
  %s5 = inlined_call_operand.vmem [shape: bf16[128,64], index: 5, kind: input, shape index: {}]
  %s6 = inlined_call_operand.vmem [shape: f32[1,64], index: 6, kind: input, shape index: {}]
  %s7 = inlined_call_operand.vmem [shape: bf16[64,9], index: 7, kind: input, shape index: {}]
  %s8 = inlined_call_operand.vmem [shape: f32[1,9], index: 8, kind: input, shape index: {}]
  %s9 = inlined_call_operand.hbm [shape: f32[8,9], index: 9, kind: output, shape index: {}]
  %s10 = sld [smem:[#allocation0]]
  $region46: #{_forward_impl.1} parent=0
    _
  %s12 = ssub.s32 1, %s10
  %s13 = scalar_select 0, %s12, %s10
  $region1: #{_forward_impl.1} parent=0
    #allocation2 [shape = 'u8[4096]{0}', space=vmem, size = 0x1000, scoped, tag = 'output window, operand 0, single buffered']
    #allocation3 [shape = 's32[1]{0}', space=sflag, size = 0x4, scoped, tag = 'scoped memory for _forward_impl.1']
    %14 = vsyncpa [#allocation3], 0
    // Predicated region
    $region2: #{_forward_impl.1} parent=1 // pred_check
      _
    $region3: #{_forward_impl.1} parent=1 // pred_check_branch
      %16 = sbr.rel (0) target = $region5
    $region4: #{_forward_impl.1} parent=1 // pred_region
      _
    $region5: #{_forward_impl.1} parent=1 // pred_fallthru
      _
    // Predicated region
    $region6: #{_forward_impl.1} parent=1 // pred_check
      _
    $region7: #{_forward_impl.1} parent=1 // pred_check_branch
      %18 = sbr.rel (0) target = $region9
    $region8: #{_forward_impl.1} parent=1 // pred_region
      _
    $region9: #{_forward_impl.1} parent=1 // pred_fallthru
      _
    // Predicated region
    $region10: #{_forward_impl.1} parent=1 // pred_check
      _
    $region11: #{_forward_impl.1} parent=1 // pred_check_branch
      %20 = sbr.rel (0) target = $region13
    $region12: #{_forward_impl.1} parent=1 // pred_region
      _
    $region13: #{_forward_impl.1} parent=1 // pred_fallthru
      _
    // Predicated region
    $region14: #{_forward_impl.1} parent=1 // pred_check
      _
    $region15: #{_forward_impl.1} parent=1 // pred_check_branch
      %22 = sbr.rel (0) target = $region17
    $region16: #{_forward_impl.1} parent=1 // pred_region
      _
    $region17: #{_forward_impl.1} parent=1 // pred_fallthru
      _
    // Predicated region
    $region18: #{_forward_impl.1} parent=1 // pred_check
      _
    $region19: #{_forward_impl.1} parent=1 // pred_check_branch
      %24 = sbr.rel (0) target = $region21
    $region20: #{_forward_impl.1} parent=1 // pred_region
      _
    $region21: #{_forward_impl.1} parent=1 // pred_fallthru
      _
    // Predicated region
    $region22: #{_forward_impl.1} parent=1 // pred_check
      _
    $region23: #{_forward_impl.1} parent=1 // pred_check_branch
      %26 = sbr.rel (0) target = $region25
    $region24: #{_forward_impl.1} parent=1 // pred_region
      _
    $region25: #{_forward_impl.1} parent=1 // pred_fallthru
      _
    // Predicated region
    $region26: #{_forward_impl.1} parent=1 // pred_check
      _
    $region27: #{_forward_impl.1} parent=1 // pred_check_branch
      %28 = sbr.rel (0) target = $region29
    $region28: #{_forward_impl.1} parent=1 // pred_region
      _
    $region29: #{_forward_impl.1} parent=1 // pred_fallthru
      _
    // Predicated region
    $region30: #{_forward_impl.1} parent=1 // pred_check
      _
    $region31: #{_forward_impl.1} parent=1 // pred_check_branch
      %30 = sbr.rel (0) target = $region33
    $region32: #{_forward_impl.1} parent=1 // pred_region
      _
    $region33: #{_forward_impl.1} parent=1 // pred_fallthru
      _
    // Predicated region
    $region34: #{_forward_impl.1} parent=1 // pred_check
      _
    $region35: #{_forward_impl.1} parent=1 // pred_check_branch
      %32 = sbr.rel (0) target = $region37
    $region36: #{_forward_impl.1} parent=1 // pred_region
      _
    $region37: #{_forward_impl.1} parent=1 // pred_fallthru
      _
    %v34 = vld [vmem:[%s0] sm:$0xff]
    %v35 = vpack.c.bf16 %v34, %v34
    %v36 = vld [vmem:[%s1] sm:$0xf]
    %v37 = vld [vmem:[%s1 + $0x4] sm:$0x1]
    %v38 = vld [vmem:[%s2] sm:$0x1]
    %v40 = vlaneseq
    %v41 = vshrl.u32 %v40, 7
    %v42 = vsub.s32 0, %v41
    %v43 = vrot.slane %v38, %v42
    %v47 = vunpack.c.l.b16 %v36
    %v48 = vunpack.c.l.b16 %v37
    %v49 = vpack.c.b16 %v48, %v47
    %vm50 = vcmask 72704
    %v52 = vsel %vm50, %v35, 0
    %vm54 = vcmask 1043456
    %vm55 = vcmask 1044480
    %v56 = vsel %vm54, 4294967295, 65535
    %v57 = vsel %vm55, %v56, 0
    %v59 = vand.u32 %v49, %v57
    %61 = vmatprep.subr.bf16.mxu0 0
    %62 = vmatpush1.bf16.msra.mxu0 0
    %63 = vmatprep.subr.bf16.mxu0 0
    %64 = vmatpush1.bf16.msra.mxu0 0
    %65 = vmatprep.subr.bf16.mxu0 0
    %66 = vmatpush1.bf16.msra.mxu0 0
    %67 = vmatprep.subr.bf16.mxu0 0
    %68 = vmatpush1.bf16.msra.mxu0 0
    %69 = vmatprep.subr.bf16.mxu0 0
    %70 = vmatpush1.bf16.msra.mxu0 0
    %71 = vmatprep.subr.bf16.mxu0 0
    %72 = vmatpush1.bf16.msra.mxu0 0
    %73 = vmatprep.subr.bf16.mxu0 0
    %74 = vmatpush1.bf16.msra.mxu0 0
    %75 = vmatprep.subr.bf16.mxu0 0
    %76 = vmatpush1.bf16.msra.mxu0 %v59
    %77 = vmatprep.subr.bf16.mxu0 0
    %78 = vmatpush2.bf16.msra.mxu0 0
    %79 = vmatprep.subr.bf16.mxu0 0
    %80 = vmatpush2.bf16.msra.mxu0 0
    %81 = vmatprep.subr.bf16.mxu0 0
    %82 = vmatpush2.bf16.msra.mxu0 0
    %83 = vmatprep.subr.bf16.mxu0 0
    %84 = vmatpush2.bf16.msra.mxu0 0
    %85 = vmatprep.subr.bf16.mxu0 0
    %86 = vmatpush2.bf16.msra.mxu0 0
    %87 = vmatprep.subr.bf16.mxu0 0
    %88 = vmatpush2.bf16.msra.mxu0 0
    %89 = vmatprep.subr.bf16.mxu0 0
    %90 = vmatpush2.bf16.msra.mxu0 0
    %91 = vmatprep.subr.bf16.mxu0 0
    %92 = vmatpush2.bf16.msra.mxu0 0
    %93 = vmatprep.mubr.bf16.mxu0 0
    %94 = vmatmul.mubr.bf16.gmra.mxu0 %v52
    %v95 = vpop.f32.mrf.mxu0
    %v96 = vadd.f32 %v43, %v95
    %v97 = vpop.f32.mrf.mxu0
    %v98 = vpop.f32.mrf.mxu0
    %v99 = vpop.f32.mrf.mxu0
    %100 = vdwg.mxu0
    %v101 = vmax.f32 %v96, 0.0
    %v102 = vpack.c.bf16 %v101, %v101
    %v103 = vld [vmem:[%s3] sm:$0xf]
    %v104 = vld [vmem:[%s3 + $0x4] sm:$0xf]
    %v105 = vld [vmem:[%s3 + $0x8] sm:$0xf]
    %v106 = vld [vmem:[%s3 + $0xc] sm:$0xf]
    %v107 = vld [vmem:[%s3 + $0x10] sm:$0xf]
    %v108 = vld [vmem:[%s3 + $0x14] sm:$0xf]
    %v109 = vld [vmem:[%s3 + $0x18] sm:$0xf]
    %v110 = vld [vmem:[%s3 + $0x1c] sm:$0xf]
    %v111 = vld [vmem:[%s3 + $0x20] sm:$0xf]
    %v112 = vld [vmem:[%s3 + $0x24] sm:$0xf]
    %v113 = vld [vmem:[%s3 + $0x28] sm:$0xf]
    %v114 = vld [vmem:[%s3 + $0x2c] sm:$0xf]
    %v115 = vld [vmem:[%s3 + $0x30] sm:$0xf]
    %v116 = vld [vmem:[%s3 + $0x34] sm:$0xf]
    %v117 = vld [vmem:[%s3 + $0x38] sm:$0xf]
    %v118 = vld [vmem:[%s3 + $0x3c] sm:$0xf]
    %v119 = vld [vmem:[%s4] sm:$0x1]
    %v121 = vlaneseq
    %v122 = vshrl.u32 %v121, 7
    %v123 = vsub.s32 0, %v122
    %v124 = vrot.slane %v119, %v123
    %v142 = vunpack.c.l.b16 %v103
    %v143 = vunpack.c.l.b16 %v104
    %v144 = vunpack.c.l.b16 %v105
    %v145 = vunpack.c.l.b16 %v106
    %v146 = vunpack.c.l.b16 %v107
    %v147 = vunpack.c.l.b16 %v108
    %v148 = vunpack.c.l.b16 %v109
    %v149 = vunpack.c.l.b16 %v110
    %v150 = vunpack.c.l.b16 %v111
    %v151 = vunpack.c.l.b16 %v112
    %v152 = vunpack.c.l.b16 %v113
    %v153 = vunpack.c.l.b16 %v114
    %v154 = vunpack.c.l.b16 %v115
    %v155 = vunpack.c.l.b16 %v116
    %v156 = vunpack.c.l.b16 %v117
    %v157 = vunpack.c.l.b16 %v118
    %v158 = vpack.c.b16 %v143, %v142
    %v159 = vpack.c.b16 %v145, %v144
    %v160 = vpack.c.b16 %v147, %v146
    %v161 = vpack.c.b16 %v149, %v148
    %v162 = vpack.c.b16 %v151, %v150
    %v163 = vpack.c.b16 %v153, %v152
    %v164 = vpack.c.b16 %v155, %v154
    %v165 = vpack.c.b16 %v157, %v156
    %174 = vmatprep.subr.bf16.mxu0 0
    %175 = vmatpush1.bf16.msra.mxu0 %v165
    %176 = vmatprep.subr.bf16.mxu0 0
    %177 = vmatpush1.bf16.msra.mxu0 %v164
    %178 = vmatprep.subr.bf16.mxu0 0
    %179 = vmatpush1.bf16.msra.mxu0 %v163
    %180 = vmatprep.subr.bf16.mxu0 0
    %181 = vmatpush1.bf16.msra.mxu0 %v162
    %182 = vmatprep.subr.bf16.mxu0 0
    %183 = vmatpush1.bf16.msra.mxu0 %v161
    %184 = vmatprep.subr.bf16.mxu0 0
    %185 = vmatpush1.bf16.msra.mxu0 %v160
    %186 = vmatprep.subr.bf16.mxu0 0
    %187 = vmatpush1.bf16.msra.mxu0 %v159
    %188 = vmatprep.subr.bf16.mxu0 0
    %189 = vmatpush1.bf16.msra.mxu0 %v158
    %190 = vmatprep.subr.bf16.mxu0 0
    %191 = vmatpush2.bf16.msra.mxu0 0
    %192 = vmatprep.subr.bf16.mxu0 0
    %193 = vmatpush2.bf16.msra.mxu0 0
    %194 = vmatprep.subr.bf16.mxu0 0
    %195 = vmatpush2.bf16.msra.mxu0 0
    %196 = vmatprep.subr.bf16.mxu0 0
    %197 = vmatpush2.bf16.msra.mxu0 0
    %198 = vmatprep.subr.bf16.mxu0 0
    %199 = vmatpush2.bf16.msra.mxu0 0
    %200 = vmatprep.subr.bf16.mxu0 0
    %201 = vmatpush2.bf16.msra.mxu0 0
    %202 = vmatprep.subr.bf16.mxu0 0
    %203 = vmatpush2.bf16.msra.mxu0 0
    %204 = vmatprep.subr.bf16.mxu0 0
    %205 = vmatpush2.bf16.msra.mxu0 0
    %206 = vmatprep.mubr.bf16.mxu0 0
    %207 = vmatmul.mubr.bf16.gmra.mxu0 %v102
    %v208 = vpop.f32.mrf.mxu0
    %v209 = vadd.f32 %v124, %v208
    %v210 = vpop.f32.mrf.mxu0
    %v211 = vpop.f32.mrf.mxu0
    %v212 = vpop.f32.mrf.mxu0
    %213 = vdwg.mxu0
    %v214 = vmax.f32 %v209, 0.0
    %v215 = vpack.c.bf16 %v214, %v214
    %v216 = vld [vmem:[%s5] sm:$0xf]
    %v217 = vld [vmem:[%s5 + $0x4] sm:$0xf]
    %v218 = vld [vmem:[%s5 + $0x8] sm:$0xf]
    %v219 = vld [vmem:[%s5 + $0xc] sm:$0xf]
    %v220 = vld [vmem:[%s5 + $0x10] sm:$0xf]
    %v221 = vld [vmem:[%s5 + $0x14] sm:$0xf]
    %v222 = vld [vmem:[%s5 + $0x18] sm:$0xf]
    %v223 = vld [vmem:[%s5 + $0x1c] sm:$0xf]
    %v224 = vld [vmem:[%s5 + $0x20] sm:$0xf]
    %v225 = vld [vmem:[%s5 + $0x24] sm:$0xf]
    %v226 = vld [vmem:[%s5 + $0x28] sm:$0xf]
    %v227 = vld [vmem:[%s5 + $0x2c] sm:$0xf]
    %v228 = vld [vmem:[%s5 + $0x30] sm:$0xf]
    %v229 = vld [vmem:[%s5 + $0x34] sm:$0xf]
    %v230 = vld [vmem:[%s5 + $0x38] sm:$0xf]
    %v231 = vld [vmem:[%s5 + $0x3c] sm:$0xf]
    %v232 = vld [vmem:[%s6] sm:$0x1]
    %v234 = vlaneseq
    %v235 = vshrl.u32 %v234, 7
    %v236 = vsub.s32 0, %v235
    %v237 = vrot.slane %v232, %v236
    %v255 = vunpack.c.l.b16 %v216
    %v256 = vunpack.c.l.b16 %v217
    %v257 = vunpack.c.l.b16 %v218
    %v258 = vunpack.c.l.b16 %v219
    %v259 = vunpack.c.l.b16 %v220
    %v260 = vunpack.c.l.b16 %v221
    %v261 = vunpack.c.l.b16 %v222
    %v262 = vunpack.c.l.b16 %v223
    %v263 = vunpack.c.l.b16 %v224
    %v264 = vunpack.c.l.b16 %v225
    %v265 = vunpack.c.l.b16 %v226
    %v266 = vunpack.c.l.b16 %v227
    %v267 = vunpack.c.l.b16 %v228
    %v268 = vunpack.c.l.b16 %v229
    %v269 = vunpack.c.l.b16 %v230
    %v270 = vunpack.c.l.b16 %v231
    %v271 = vpack.c.b16 %v256, %v255
    %v272 = vpack.c.b16 %v258, %v257
    %v273 = vpack.c.b16 %v260, %v259
    %v274 = vpack.c.b16 %v262, %v261
    %v275 = vpack.c.b16 %v264, %v263
    %v276 = vpack.c.b16 %v266, %v265
    %v277 = vpack.c.b16 %v268, %v267
    %v278 = vpack.c.b16 %v270, %v269
    %287 = vmatprep.subr.bf16.mxu0 0
    %288 = vmatpush1.bf16.msra.mxu0 %v278
    %289 = vmatprep.subr.bf16.mxu0 0
    %290 = vmatpush1.bf16.msra.mxu0 %v277
    %291 = vmatprep.subr.bf16.mxu0 0
    %292 = vmatpush1.bf16.msra.mxu0 %v276
    %293 = vmatprep.subr.bf16.mxu0 0
    %294 = vmatpush1.bf16.msra.mxu0 %v275
    %295 = vmatprep.subr.bf16.mxu0 0
    %296 = vmatpush1.bf16.msra.mxu0 %v274
    %297 = vmatprep.subr.bf16.mxu0 0
    %298 = vmatpush1.bf16.msra.mxu0 %v273
    %299 = vmatprep.subr.bf16.mxu0 0
    %300 = vmatpush1.bf16.msra.mxu0 %v272
    %301 = vmatprep.subr.bf16.mxu0 0
    %302 = vmatpush1.bf16.msra.mxu0 %v271
    %303 = vmatprep.subr.bf16.mxu0 0
    %304 = vmatpush2.bf16.msra.mxu0 0
    %305 = vmatprep.subr.bf16.mxu0 0
    %306 = vmatpush2.bf16.msra.mxu0 0
    %307 = vmatprep.subr.bf16.mxu0 0
    %308 = vmatpush2.bf16.msra.mxu0 0
    %309 = vmatprep.subr.bf16.mxu0 0
    %310 = vmatpush2.bf16.msra.mxu0 0
    %311 = vmatprep.subr.bf16.mxu0 0
    %312 = vmatpush2.bf16.msra.mxu0 0
    %313 = vmatprep.subr.bf16.mxu0 0
    %314 = vmatpush2.bf16.msra.mxu0 0
    %315 = vmatprep.subr.bf16.mxu0 0
    %316 = vmatpush2.bf16.msra.mxu0 0
    %317 = vmatprep.subr.bf16.mxu0 0
    %318 = vmatpush2.bf16.msra.mxu0 0
    %319 = vmatprep.mubr.bf16.mxu0 0
    %320 = vmatmul.mubr.bf16.gmra.mxu0 %v215
    %v321 = vpop.f32.mrf.mxu0
    %v322 = vadd.f32 %v237, %v321
    %v323 = vpop.f32.mrf.mxu0
    %v324 = vpop.f32.mrf.mxu0
    %v325 = vpop.f32.mrf.mxu0
    %326 = vdwg.mxu0
    %v327 = vmax.f32 %v322, 0.0
    %v328 = vpack.c.bf16 %v327, %v327
    %v329 = vld [vmem:[%s7] sm:$0xf]
    %v330 = vld [vmem:[%s7 + $0x4] sm:$0xf]
    %v331 = vld [vmem:[%s7 + $0x8] sm:$0xf]
    %v332 = vld [vmem:[%s7 + $0xc] sm:$0xf]
    %v333 = vld [vmem:[%s7 + $0x10] sm:$0xf]
    %v334 = vld [vmem:[%s7 + $0x14] sm:$0xf]
    %v335 = vld [vmem:[%s7 + $0x18] sm:$0xf]
    %v336 = vld [vmem:[%s7 + $0x1c] sm:$0xf]
    %v337 = vld [vmem:[%s8] sm:$0x1]
    %v339 = vlaneseq
    %v340 = vshrl.u32 %v339, 7
    %v341 = vsub.s32 0, %v340
    %v342 = vrot.slane %v337, %v341
    %v352 = vunpack.c.l.b16 %v329
    %v353 = vunpack.c.l.b16 %v330
    %v354 = vunpack.c.l.b16 %v331
    %v355 = vunpack.c.l.b16 %v332
    %v356 = vunpack.c.l.b16 %v333
    %v357 = vunpack.c.l.b16 %v334
    %v358 = vunpack.c.l.b16 %v335
    %v359 = vunpack.c.l.b16 %v336
    %v360 = vpack.c.b16 %v353, %v352
    %v361 = vpack.c.b16 %v355, %v354
    %v362 = vpack.c.b16 %v357, %v356
    %v363 = vpack.c.b16 %v359, %v358
    %vm368 = vcmask 523264
    %v370 = vsel %vm368, %v328, 0
    %372 = vmatprep.subr.bf16.mxu0 0
    %373 = vmatpush1.bf16.msra.mxu0 0
    %374 = vmatprep.subr.bf16.mxu0 0
    %375 = vmatpush1.bf16.msra.mxu0 0
    %376 = vmatprep.subr.bf16.mxu0 0
    %377 = vmatpush1.bf16.msra.mxu0 0
    %378 = vmatprep.subr.bf16.mxu0 0
    %379 = vmatpush1.bf16.msra.mxu0 0
    %380 = vmatprep.subr.bf16.mxu0 0
    %381 = vmatpush1.bf16.msra.mxu0 %v363
    %382 = vmatprep.subr.bf16.mxu0 0
    %383 = vmatpush1.bf16.msra.mxu0 %v362
    %384 = vmatprep.subr.bf16.mxu0 0
    %385 = vmatpush1.bf16.msra.mxu0 %v361
    %386 = vmatprep.subr.bf16.mxu0 0
    %387 = vmatpush1.bf16.msra.mxu0 %v360
    %388 = vmatprep.subr.bf16.mxu0 0
    %389 = vmatpush2.bf16.msra.mxu0 0
    %390 = vmatprep.subr.bf16.mxu0 0
    %391 = vmatpush2.bf16.msra.mxu0 0
    %392 = vmatprep.subr.bf16.mxu0 0
    %393 = vmatpush2.bf16.msra.mxu0 0
    %394 = vmatprep.subr.bf16.mxu0 0
    %395 = vmatpush2.bf16.msra.mxu0 0
    %396 = vmatprep.subr.bf16.mxu0 0
    %397 = vmatpush2.bf16.msra.mxu0 0
    %398 = vmatprep.subr.bf16.mxu0 0
    %399 = vmatpush2.bf16.msra.mxu0 0
    %400 = vmatprep.subr.bf16.mxu0 0
    %401 = vmatpush2.bf16.msra.mxu0 0
    %402 = vmatprep.subr.bf16.mxu0 0
    %403 = vmatpush2.bf16.msra.mxu0 0
    %404 = vmatprep.mubr.bf16.mxu0 0
    %405 = vmatmul.mubr.bf16.gmra.mxu0 %v370
    %v406 = vpop.f32.mrf.mxu0
    %v407 = vadd.f32 %v342, %v406
    %v408 = vpop.f32.mrf.mxu0
    %v409 = vpop.f32.mrf.mxu0
    %v410 = vpop.f32.mrf.mxu0
    %411 = vdwg.mxu0
    %412 = vst.msk [vmem:[#allocation2] sm:$0xff] %vm50, %v407
    // Predicated region
    $region38: #{_forward_impl.1} parent=1 // pred_check
      _
    $region39: #{_forward_impl.1} parent=1 // pred_check_branch
      %414 = sbr.rel (0) target = $region41
    $region40: #{_forward_impl.1} parent=1 // pred_region
      %s416 = ssub.s32 128, 128
      %417 = vsyncadd [#allocation3], %s416
      %s419 = sshll.u32 [#allocation2], 4
      %s420 = int_to_ptr.vmem [resolvable:$true] %s419
      %422 = dma.vmem_to_hbm [thread:$0]  %s420, 128, %s9, [#allocation3]
    $region41: #{_forward_impl.1} parent=1 // pred_fallthru
      _
    // Predicated region
    $region42: #{_forward_impl.1} parent=1 // pred_check
      _
    $region43: #{_forward_impl.1} parent=1 // pred_check_branch
      %424 = sbr.rel (0) target = $region45
    $region44: #{_forward_impl.1} parent=1 // pred_region
      %425 = dma.done [#allocation3], 128
    $region45: #{_forward_impl.1} parent=1 // pred_fallthru
      _
    %426 = vsyncpa [#allocation3], 1

</llo_original>
